<compile_context>
chip_gen: v7x
topology: tpu7x:2x2x1
jax: 0.10.0
libtpu: 0.0.40
codegen_flags: <defaults>
</compile_context>

<pallas_src>
import jax
import jax.numpy as jnp
import numpy as np
from jax.experimental import pallas as pl
from jax.experimental.pallas import tpu as pltpu


def _round_up(a, b):
    return (a + b - 1) // b * b


def _vmem_budget_bytes():
    """~70% of per-core VMEM capacity; conservative fallback if unqueryable."""
    try:
        cap = int(pltpu.get_tpu_info().vmem_capacity_bytes)
        return max(min(int(cap * 0.7), 96 * 1024 * 1024), 32 * 1024 * 1024)
    except Exception:
        # Safe on v5e/v6e (128 MiB physical) and v7x (64 MiB physical).
        return 48 * 1024 * 1024


def max_pool_stride1(
    x,
    *,
    target_block_bytes=8 * 1024 * 1024,
    min_block_bytes=4 * 1024 * 1024,
    min_steps=8,
):
    """x: (N, C, H, W) -> (N, C, H, W); 2x2 max pool, stride 1, replicate pad."""
    N, C, H, W = x.shape
    num_images = N * C
    L = H * W
    x_flat = x.reshape(num_images, L)  # metadata-only for contiguous NCHW

    itemsize = jnp.dtype(x.dtype).itemsize
    bytes_per_image = L * itemsize                          # real HBM bytes/image
    padded_bytes_per_image = _round_up(L, 128) * itemsize   # lane-padded VMEM

    # --- block sizing from real bytes ---------------------------------------
    tb_target = max(1, target_block_bytes // bytes_per_image)
    tb_floor = max(1, min_block_bytes // bytes_per_image)
    tb_steps = pl.cdiv(num_images, min_steps)   # >= min_steps steps if possible
    tb = min(tb_target, max(tb_steps, tb_floor))
    # VMEM check: 2x double-buffered in + out (4 blocks) + concat/where temps
    # (~3-4 blocks) -> budget ~8 blocks resident per step.
    vmem_budget = _vmem_budget_bytes()
    tb_vmem = max(1, (vmem_budget // 8) // padded_bytes_per_image)
    tb = int(max(1, min(tb, tb_vmem, num_images)))

    grid = (pl.cdiv(num_images, tb),)
    # Ragged last block is fine: the op is purely per-row (per-image), so the
    # stale rows of a partial block never contaminate valid rows, and Pallas
    # masks their write-back.

    # Precomputed lane mask: 1 where the flattened position is the last column
    # of its row (col == W-1), i.e. where the shift-by-1 neighbour must be
    # replaced by the element itself (replicate padding).
    w_edge = (np.arange(L, dtype=np.int32) % W == W - 1).astype(np.int32)
    w_edge = jnp.asarray(w_edge).reshape(1, L)

    def kernel(edge_ref, x_ref, o_ref):
        x_blk = x_ref[...]                                  # (tb, L), lane-dense
        edge = jnp.broadcast_to(edge_ref[...] != 0, x_blk.shape)
        # Right neighbour along W: shift-by-1 on the flat lane axis, replicate
        # at col == W-1 (the shifted value there is the next row's col 0).
        if L > 1:
            right = jnp.concatenate([x_blk[:, 1:], x_blk[:, -1:]], axis=1)
            right = jnp.where(edge, x_blk, right)
        else:
            right = x_blk
        hm = jnp.maximum(x_blk, right)
        # Down neighbour along H: shift-by-W; the tail re-uses the last row,
        # which is exactly the replicate-pad behaviour (no mask needed).
        if H > 1:
            down = jnp.concatenate([hm[:, W:], hm[:, -W:]], axis=1)
        else:
            down = hm
        o_ref[...] = jnp.maximum(hm, down)

    out_flat = pl.pallas_call(
        kernel,
        out_shape=jax.ShapeDtypeStruct((num_images, L), x.dtype),
        grid_spec=pltpu.PrefetchScalarGridSpec(
            num_scalar_prefetch=0,
            grid=grid,
            in_specs=[
                pl.BlockSpec((1, L), lambda i: (0, 0)),    # tiny edge mask
                pl.BlockSpec((tb, L), lambda i: (i, 0)),   # lane-dense input
            ],
            out_specs=pl.BlockSpec((tb, L), lambda i: (i, 0)),
        ),
        compiler_params=pltpu.CompilerParams(
            dimension_semantics=("parallel",),
            vmem_limit_bytes=vmem_budget,
        ),
        cost_estimate=pl.CostEstimate(
            flops=3 * num_images * L,
            transcendentals=0,
            bytes_accessed=2 * num_images * L * itemsize,
        ),
    )(w_edge, x_flat)

    return out_flat.reshape(N, C, H, W)


def _reference(x):
    # Pure-JAX reference of the PyTorch forward for verification.
    N, C, H, W = x.shape
    xp = jnp.pad(x, ((0, 0), (0, 0), (0, 1), (0, 1)), mode="edge")
    return jnp.maximum(
        jnp.maximum(xp[:, :, :H, :W], xp[:, :, 1:H + 1, :W]),
        jnp.maximum(xp[:, :, :H, 1:W + 1], xp[:, :, 1:H + 1, 1:W + 1]),
    )


if __name__ == "__main__":
    key = jax.random.PRNGKey(0)
    k0, k1, k2 = jax.random.split(key, 3)

    # Primary check: NCHW feature map implied by the module.
    x = jax.random.normal(k0, (2, 4, 16, 16), dtype=jnp.float32)
    out = jax.block_until_ready(max_pool_stride1(x))
    assert out.shape == x.shape
    assert jnp.allclose(out, _reference(x)), "mismatch vs reference (2,4,16,16)"

    # Odd spatial size (classic 13x13 detector head): H*W = 169, not a
    # multiple of 128 — full-extent last-dim block keeps it legal.
    x2 = jax.random.normal(k1, (1, 3, 13, 13), dtype=jnp.float32)
    out2 = jax.block_until_ready(max_pool_stride1(x2))
    assert out2.shape == x2.shape
    assert jnp.allclose(out2, _reference(x2)), "mismatch vs reference (1,3,13,13)"

    # Force a multi-step grid with a ragged last block (num_images=10, tb=3).
    x3 = jax.random.normal(k2, (2, 5, 16, 16), dtype=jnp.float32)
    out3 = jax.block_until_ready(
        max_pool_stride1(
            x3,
            target_block_bytes=4 * 1024,
            min_block_bytes=2 * 1024,
            min_steps=4,
        )
    )
    assert jnp.allclose(out3, _reference(x3)), "mismatch vs reference (ragged)"

    print("KERNEL_OK")
</pallas_src>

<mosaic_0001>
module attributes {stable_mosaic.version = 11 : i64} {
  func.func @kernel(%arg0: i32, %arg1: memref<1x256xi32, #tpu.memory_space<vmem>>, %arg2: memref<8x256xf32, #tpu.memory_space<vmem>>, %arg3: memref<8x256xf32, #tpu.memory_space<vmem>>) attributes {dimension_semantics = [#tpu.dimension_semantics<parallel>], iteration_bounds = array<i64: 1>, scalar_prefetch = 0 : i64, scratch_operands = 0 : i64, tpu.core_type = #tpu.core_type<tc>, window_params = [{pipeline_mode = #tpu.pipeline_mode<synchronous>, transform_indices = @transform_0, window_bounds = array<i64: 1, 256>}, {transform_indices = @transform_1, window_bounds = array<i64: 8, 256>}, {transform_indices = @transform_2, window_bounds = array<i64: 8, 256>}]} {
    %c0 = arith.constant 0 : index
    %c0_0 = arith.constant 0 : index
    %0 = vector.load %arg2[%c0, %c0_0] : memref<8x256xf32, #tpu.memory_space<vmem>>, vector<8x256xf32>
    %c0_1 = arith.constant 0 : index
    %c0_2 = arith.constant 0 : index
    %1 = vector.load %arg1[%c0_1, %c0_2] : memref<1x256xi32, #tpu.memory_space<vmem>>, vector<1x256xi32>
    %c0_i32 = arith.constant 0 : i32
    %2 = vector.broadcast %c0_i32 : i32 to vector<1x256xi32>
    %3 = arith.cmpi ne, %1, %2 : vector<1x256xi32>
    %4 = vector.shape_cast %3 : vector<1x256xi1> to vector<1x256xi1>
    %5 = vector.broadcast %4 : vector<1x256xi1> to vector<8x256xi1>
    %6 = vector.extract_strided_slice %0 {offsets = [0, 1], sizes = [8, 255], strides = [1, 1]} : vector<8x256xf32> to vector<8x255xf32>
    %7 = vector.extract_strided_slice %0 {offsets = [0, 255], sizes = [8, 1], strides = [1, 1]} : vector<8x256xf32> to vector<8x1xf32>
    %8 = tpu.concatenate %6, %7 in 1 : vector<8x255xf32>, vector<8x1xf32> -> vector<8x256xf32>
    %9 = arith.select %5, %0, %8 : vector<8x256xi1>, vector<8x256xf32>
    %10 = arith.maximumf %0, %9 : vector<8x256xf32>
    %11 = vector.extract_strided_slice %10 {offsets = [0, 16], sizes = [8, 240], strides = [1, 1]} : vector<8x256xf32> to vector<8x240xf32>
    %12 = vector.extract_strided_slice %10 {offsets = [0, 240], sizes = [8, 16], strides = [1, 1]} : vector<8x256xf32> to vector<8x16xf32>
    %13 = tpu.concatenate %11, %12 in 1 : vector<8x240xf32>, vector<8x16xf32> -> vector<8x256xf32>
    %14 = arith.maximumf %10, %13 : vector<8x256xf32>
    %c0_3 = arith.constant 0 : index
    %c0_4 = arith.constant 0 : index
    %15 = vector.load %arg3[%c0_3, %c0_4] : memref<8x256xf32, #tpu.memory_space<vmem>>, vector<8x256xf32>
    tpu.vector_store %arg3[%c0_3, %c0_4], %14 {strides = array<i32>} : memref<8x256xf32, #tpu.memory_space<vmem>>, vector<8x256xf32>,
    return
  }
  func.func @transform_0(%arg0: i32) -> (i32, i32) {
    %c0_i32 = arith.constant 0 : i32
    %c0_i32_0 = arith.constant 0 : i32
    %c0_i32_1 = arith.constant 0 : i32
    return %c0_i32, %c0_i32_0 : i32, i32
  }
  func.func @transform_1(%arg0: i32) -> (i32, i32) {
    %c0_i32 = arith.constant 0 : i32
    %c0_i32_0 = arith.constant 0 : i32
    return %arg0, %c0_i32 : i32, i32
  }
  func.func @transform_2(%arg0: i32) -> (i32, i32) {
    %c0_i32 = arith.constant 0 : i32
    %c0_i32_0 = arith.constant 0 : i32
    return %arg0, %c0_i32 : i32, i32
  }
}

</mosaic_0001>

<llo_original>
// kernel: tpu_custom_call.1
$region0: #{tpu_custom_call.1}
  #allocation0 [shape = 'u32[]', space=smem, size = 0x4, offset = 0x4, fixed_abs, tag = 'smem constant byte address 0x4 - core index']
  #allocation1 [shape = 'u32[144,128]{1,0:T(1,128)}', space=vmem, size = 0x12000, scoped, tag = 'internal scratch']
  %s0 = inlined_call_operand.hbm [shape: s32[1,256], index: 0, kind: input, shape index: {}]
  %s1 = inlined_call_operand.hbm [shape: f32[8,256], index: 1, kind: input, shape index: {}]
  %s2 = inlined_call_operand.hbm [shape: f32[8,256], index: 2, kind: output, shape index: {}]
  %s3 = sld [smem:[#allocation0]]
  $region26: #{tpu_custom_call.1} parent=0
    _
  %s5 = ssub.s32 1, %s3
  %s6 = scalar_select 0, %s5, %s3
  $region1: #{tpu_custom_call.1} parent=0
    #allocation2 [shape = 'u8[1024]{0}', space=vmem, size = 0x400, scoped, tag = 'input window, operand 0, single buffered']
    #allocation3 [shape = 's32[1]{0}', space=sflag, size = 0x4, scoped, tag = 'scoped memory for tpu_custom_call.1']
    #allocation4 [shape = 's32[1]{0}', space=sflag, size = 0x4, scoped, tag = 'scoped memory for tpu_custom_call.1']
    #allocation5 [shape = 'u8[8192]{0}', space=vmem, size = 0x2000, scoped, tag = 'input window, operand 1, single buffered']
    #allocation6 [shape = 's32[1]{0}', space=sflag, size = 0x4, scoped, tag = 'scoped memory for tpu_custom_call.1']
    #allocation7 [shape = 'u8[8192]{0}', space=vmem, size = 0x2000, scoped, tag = 'output window, operand 0, single buffered']
    %7 = vsyncpa [#allocation3], 0
    %8 = vsyncpa [#allocation6], 0
    %9 = vsyncpa [#allocation4], 0
    // Predicated region
    $region2: #{tpu_custom_call.1} parent=1 // pred_check
      _
    $region3: #{tpu_custom_call.1} parent=1 // pred_check_branch
      %11 = sbr.rel (0) target = $region5
    $region4: #{tpu_custom_call.1} parent=1 // pred_region
      %s13 = ssub.s32 32, 32
      %14 = vsyncadd [#allocation3], %s13
      %s16 = sshll.u32 [#allocation2], 4
      %s17 = int_to_ptr.vmem [resolvable:$true] %s16
      %19 = dma.hbm_to_vmem [thread:$0]  %s0, 32, %s17, [#allocation3]
    $region5: #{tpu_custom_call.1} parent=1 // pred_fallthru
      _
    // Predicated region
    $region6: #{tpu_custom_call.1} parent=1 // pred_check
      _
    $region7: #{tpu_custom_call.1} parent=1 // pred_check_branch
      %21 = sbr.rel (0) target = $region9
    $region8: #{tpu_custom_call.1} parent=1 // pred_region
      %s23 = ssub.s32 256, 256
      %24 = vsyncadd [#allocation6], %s23
      %s26 = sshll.u32 [#allocation5], 4
      %s27 = int_to_ptr.vmem [resolvable:$true] %s26
      %29 = dma.hbm_to_vmem [thread:$0]  %s1, 256, %s27, [#allocation6]
    $region9: #{tpu_custom_call.1} parent=1 // pred_fallthru
      _
    // Predicated region
    $region10: #{tpu_custom_call.1} parent=1 // pred_check
      _
    $region11: #{tpu_custom_call.1} parent=1 // pred_check_branch
      %31 = sbr.rel (0) target = $region13
    $region12: #{tpu_custom_call.1} parent=1 // pred_region
      %32 = dma.done [#allocation3], 32
    $region13: #{tpu_custom_call.1} parent=1 // pred_fallthru
      _
    // Predicated region
    $region14: #{tpu_custom_call.1} parent=1 // pred_check
      _
    $region15: #{tpu_custom_call.1} parent=1 // pred_check_branch
      %34 = sbr.rel (0) target = $region17
    $region16: #{tpu_custom_call.1} parent=1 // pred_region
      %35 = dma.done [#allocation6], 256
    $region17: #{tpu_custom_call.1} parent=1 // pred_fallthru
      _
    %v36 = vld [vmem:[#allocation5] sm:$0xff]
    %v37 = vld [vmem:[#allocation5 + $0x8] sm:$0xff]
    %v38 = vld [vmem:[#allocation2] sm:$0x3]
    %vm39 = vcmp.ne.s32.totalorder %v38, 0
    %v40 = vsel %vm39, 1, 0
    %v41 = vlaneseq
    %v42 = vshrl.u32 %v41, 7
    %v43 = vsub.s32 0, %v42
    %v44 = vrot.slane %v40, %v43
    %v45 = vlaneseq
    %v46 = vshrl.u32 %v45, 7
    %v47 = vsub.s32 1, %v46
    %v48 = vrot.slane %v40, %v47
    %vm49 = vcmp.eq.s32.totalorder %v44, 1
    %vm50 = vcmp.eq.s32.totalorder %v48, 1
    %53 = vrot.lane.b32.xlu0 %v36, 127
    %v54 = vpop.permute.xlu0 %53
    %55 = vrot.lane.b32.xlu0 %v37, 127
    %v56 = vpop.permute.xlu0 %55
    %vm57 = vcmask 1039360
    %v58 = vsel %vm57, %v54, %v56
    %v61 = vsel %vm57, %v56, %v37
    %v62 = vsel %vm49, %v36, %v58
    %v63 = vsel %vm50, %v37, %v61
    %v64 = vmax.f32 %v36, %v62
    %v65 = vmax.f32 %v37, %v63
    %68 = vrot.lane.b32.xlu0 %v64, 112
    %v69 = vpop.permute.xlu0 %68
    %70 = vrot.lane.b32.xlu0 %v65, 112
    %v71 = vpop.permute.xlu0 %70
    %vm72 = vcmask 916480
    %v73 = vsel %vm72, %v69, %v71
    %v76 = vsel %vm72, %v71, %v65
    %v77 = vmax.f32 %v64, %v73
    %v78 = vmax.f32 %v65, %v76
    %79 = vst [vmem:[#allocation7] sm:$0xff] %v77
    %80 = vst [vmem:[#allocation7 + $0x8] sm:$0xff] %v78
    // Predicated region
    $region18: #{tpu_custom_call.1} parent=1 // pred_check
      _
    $region19: #{tpu_custom_call.1} parent=1 // pred_check_branch
      %82 = sbr.rel (0) target = $region21
    $region20: #{tpu_custom_call.1} parent=1 // pred_region
      %s84 = ssub.s32 256, 256
      %85 = vsyncadd [#allocation4], %s84
      %s87 = sshll.u32 [#allocation7], 4
      %s88 = int_to_ptr.vmem [resolvable:$true] %s87
      %90 = dma.vmem_to_hbm [thread:$0]  %s88, 256, %s2, [#allocation4]
    $region21: #{tpu_custom_call.1} parent=1 // pred_fallthru
      _
    // Predicated region
    $region22: #{tpu_custom_call.1} parent=1 // pred_check
      _
    $region23: #{tpu_custom_call.1} parent=1 // pred_check_branch
      %92 = sbr.rel (0) target = $region25
    $region24: #{tpu_custom_call.1} parent=1 // pred_region
      %93 = dma.done [#allocation4], 256
    $region25: #{tpu_custom_call.1} parent=1 // pred_fallthru
      _
    %94 = vsyncpa [#allocation3], 1
    %95 = vsyncpa [#allocation6], 1
    %96 = vsyncpa [#allocation4], 1

</llo_original>
